<compile_context>
chip_gen: v6e
topology: v6e:2x2x1
jax: 0.10.0
libtpu: 0.0.40
codegen_flags: <defaults>
</compile_context>

<pallas_src>
import jax
import jax.numpy as jnp
import numpy as np
from jax.experimental import pallas as pl
from jax.experimental.pallas import tpu as pltpu

_LANES = 128


def _round_up(x: int, m: int) -> int:
    return ((x + m - 1) // m) * m


def _largest_divisor_at_most(n: int, cap: int) -> int:
    cap = max(1, min(cap, n))
    for d in range(cap, 0, -1):
        if n % d == 0:
            return d
    return 1


def _target_block_bytes() -> int:
    """Per-buffer block-size target, tuned per TPU generation."""
    try:
        kind = jax.devices()[0].device_kind.lower()
    except Exception:
        kind = ""
    if ("v5 lite" in kind) or ("v5e" in kind) or ("v5litepod" in kind):
        return 2 << 20   # ~94% of HBM roofline on v5e; fits 16 MiB scoped VMEM
    return 4 << 20       # v6e / v7x: bigger blocks amortize per-step overhead


def _drop_path_kernel(scale_ref, x_ref, o_ref):
    # scale_ref: (b_tile, 1, 1)        per-sample keep/scale, x.dtype, VMEM
    # x_ref/o_ref: (b_tile, rt, 128)   activation tile,       x.dtype, VMEM
    o_ref[...] = x_ref[...] * scale_ref[...]


def drop_path_pallas(x, drop_prob: float, *, key=None, seed: int = 0,
                     training: bool = True, scale_by_keep: bool = True):
    """Pallas equivalent of drop_path(x, drop_prob, training, scale_by_keep)."""
    if drop_prob == 0.0 or not training:
        return x
    keep_prob = 1.0 - drop_prob

    B = x.shape[0]
    N = int(np.prod(x.shape[1:]))
    itemsize = jnp.dtype(x.dtype).itemsize

    # Per-sample keep decision + scaling, computed once in the wrapper.
    # NOTE: pass a fresh `key` every training step; the default seed reuses
    # the same stochastic-depth mask across calls.
    if key is None:
        key = jax.random.PRNGKey(seed)
    keep = jax.random.bernoulli(key, p=keep_prob, shape=(B,))
    scale = keep.astype(jnp.float32)
    if keep_prob > 0.0 and scale_by_keep:
        scale = scale * jnp.float32(1.0 / keep_prob)
    scale = scale.astype(x.dtype).reshape(B, 1, 1)

    # ---- tiling -------------------------------------------------------------
    sub = max(8, 32 // itemsize)                 # dtype-aware sublane granularity
    target = _target_block_bytes()

    rows0 = -(-N // _LANES)
    rows = _round_up(rows0, sub)                 # minimal (sublane-only) padding

    budget_rows = max(sub, (target // (_LANES * itemsize)) // sub * sub)
    if rows <= budget_rows:
        row_tile = rows                          # whole sample in one block
    else:
        d = _largest_divisor_at_most(rows // sub, budget_rows // sub) * sub
        if 4 * d >= budget_rows:
            row_tile = d                         # good divisor -> no extra padding
        else:
            row_tile = budget_rows               # pad a bit for a large, even tile
            rows = _round_up(rows, row_tile)
    row_blocks = rows // row_tile

    # Pack several samples per block when a single sample is small, but keep
    # >= 2 total grid steps so v7x megacore can shard the parallel axes.
    if row_blocks == 1 and B > 1:
        per_sample_bytes = rows * _LANES * itemsize
        max_b = max(1, target // max(1, per_sample_bytes))
        max_b = min(max_b, max(1, B // 2))
        b_tile = _largest_divisor_at_most(B, max_b)
    else:
        b_tile = 1

    n_pad = rows * _LANES
    # Fast path: lane/sublane-aligned inputs need no pad / slice (reshape is free).
    xf = x.reshape(B, N)
    if n_pad != N:
        xf = jnp.pad(xf, ((0, 0), (0, n_pad - N)))
    x3 = xf.reshape(B, rows, _LANES)

    grid = (B // b_tile, row_blocks)
    bytes_accessed = 2 * B * n_pad * itemsize + B * itemsize

    out3 = pl.pallas_call(
        _drop_path_kernel,
        out_shape=jax.ShapeDtypeStruct((B, rows, _LANES), x.dtype),
        grid=grid,
        in_specs=[
            pl.BlockSpec((b_tile, 1, 1), lambda b, r: (b, 0, 0)),            # scale
            pl.BlockSpec((b_tile, row_tile, _LANES), lambda b, r: (b, r, 0)),  # x
        ],
        out_specs=pl.BlockSpec((b_tile, row_tile, _LANES), lambda b, r: (b, r, 0)),
        compiler_params=pltpu.CompilerParams(
            dimension_semantics=("parallel", "parallel"),
            vmem_limit_bytes=32 << 20),
        cost_estimate=pl.CostEstimate(
            flops=int(B * n_pad), transcendentals=0,
            bytes_accessed=int(bytes_accessed)),
    )(scale, x3)

    out = out3.reshape(B, n_pad)
    if n_pad != N:
        out = out[:, :N]
    return out.reshape(x.shape)


class DropPath:
    """Mirror of the PyTorch DropPath module (forward pass)."""

    def __init__(self, drop_prob=None, scale_by_keep=True):
        self.drop_prob = drop_prob if drop_prob is not None else 0.0
        self.scale_by_keep = scale_by_keep
        self.training = True

    def __call__(self, x, seed: int = 0, key=None):
        return drop_path_pallas(x, self.drop_prob, key=key, seed=seed,
                                training=self.training,
                                scale_by_keep=self.scale_by_keep)


if __name__ == "__main__":
    key = jax.random.PRNGKey(0)
    x = jax.random.normal(key, (2, 4, 16, 16), dtype=jnp.float32)

    drop_prob = 0.3
    module = DropPath(drop_prob=drop_prob, scale_by_keep=True)

    # training=True path (runs the Pallas kernel)
    y = jax.block_until_ready(module(x, seed=0))
    assert y.shape == x.shape and y.dtype == x.dtype

    # semantics check: each sample is either zeroed or scaled by 1/keep_prob
    keep_prob = 1.0 - drop_prob
    y_np, x_np = np.asarray(y), np.asarray(x)
    for b in range(x.shape[0]):
        is_zero = np.allclose(y_np[b], 0.0)
        is_scaled = np.allclose(y_np[b], x_np[b] / keep_prob, rtol=1e-5, atol=1e-5)
        assert is_zero or is_scaled, "per-sample mask semantics violated"

    # non-lane-aligned shape exercises the pad/slice path
    x2 = jax.random.normal(jax.random.PRNGKey(1), (3, 5, 7, 9), dtype=jnp.float32)
    y2 = jax.block_until_ready(
        drop_path_pallas(x2, 0.5, key=jax.random.PRNGKey(2), training=True))
    y2_np, x2_np = np.asarray(y2), np.asarray(x2)
    for b in range(x2.shape[0]):
        ok = (np.allclose(y2_np[b], 0.0)
              or np.allclose(y2_np[b], x2_np[b] / 0.5, rtol=1e-5, atol=1e-5))
        assert ok, "padded-path per-sample semantics violated"

    # bf16 exercises dtype-aware sublane rounding
    xb = x.astype(jnp.bfloat16)
    yb = jax.block_until_ready(module(xb, key=jax.random.PRNGKey(3)))
    assert yb.shape == xb.shape and yb.dtype == jnp.bfloat16
    assert np.all(np.isfinite(np.asarray(yb, dtype=np.float32)))

    # drop_prob=1.0 edge case: must produce zeros, not NaN
    y_all = jax.block_until_ready(DropPath(drop_prob=1.0)(x, seed=1))
    assert np.all(np.isfinite(np.asarray(y_all)))
    assert np.allclose(np.asarray(y_all), 0.0)

    # eval path (identity, no kernel)
    module.training = False
    y_eval = jax.block_until_ready(module(x))
    assert np.allclose(np.asarray(y_eval), x_np)

    print("KERNEL_OK")
</pallas_src>

<mosaic_0001>
module attributes {stable_mosaic.version = 11 : i64} {
  func.func @_drop_path_kernel(%arg0: i32, %arg1: i32, %arg2: memref<1x1x1xf32, #tpu.memory_space<vmem>>, %arg3: memref<1x8x128xf32, #tpu.memory_space<vmem>>, %arg4: memref<1x8x128xf32, #tpu.memory_space<vmem>>) attributes {dimension_semantics = [#tpu.dimension_semantics<parallel>, #tpu.dimension_semantics<parallel>], iteration_bounds = array<i64: 2, 1>, scalar_prefetch = 0 : i64, scratch_operands = 0 : i64, tpu.core_type = #tpu.core_type<tc>, window_params = [{transform_indices = @transform_0, window_bounds = array<i64: 1, 1, 1>}, {transform_indices = @transform_1, window_bounds = array<i64: 1, 8, 128>}, {transform_indices = @transform_2, window_bounds = array<i64: 1, 8, 128>}]} {
    %c0 = arith.constant 0 : index
    %c0_0 = arith.constant 0 : index
    %c0_1 = arith.constant 0 : index
    %0 = vector.load %arg3[%c0, %c0_0, %c0_1] : memref<1x8x128xf32, #tpu.memory_space<vmem>>, vector<1x8x128xf32>
    %c0_2 = arith.constant 0 : index
    %c0_3 = arith.constant 0 : index
    %c0_4 = arith.constant 0 : index
    %1 = vector.load %arg2[%c0_2, %c0_3, %c0_4] : memref<1x1x1xf32, #tpu.memory_space<vmem>>, vector<1x1x1xf32>
    %2 = vector.broadcast %1 : vector<1x1x1xf32> to vector<1x8x128xf32>
    %3 = arith.mulf %0, %2 : vector<1x8x128xf32>
    %c0_5 = arith.constant 0 : index
    %c0_6 = arith.constant 0 : index
    %c0_7 = arith.constant 0 : index
    %4 = vector.load %arg4[%c0_5, %c0_6, %c0_7] : memref<1x8x128xf32, #tpu.memory_space<vmem>>, vector<1x8x128xf32>
    tpu.vector_store %arg4[%c0_5, %c0_6, %c0_7], %3 {strides = array<i32>} : memref<1x8x128xf32, #tpu.memory_space<vmem>>, vector<1x8x128xf32>,
    return
  }
  func.func @transform_0(%arg0: i32, %arg1: i32) -> (i32, i32, i32) {
    %c0_i32 = arith.constant 0 : i32
    %c0_i32_0 = arith.constant 0 : i32
    %c0_i32_1 = arith.constant 0 : i32
    return %arg0, %c0_i32, %c0_i32_0 : i32, i32, i32
  }
  func.func @transform_1(%arg0: i32, %arg1: i32) -> (i32, i32, i32) {
    %c0_i32 = arith.constant 0 : i32
    %c0_i32_0 = arith.constant 0 : i32
    return %arg0, %arg1, %c0_i32 : i32, i32, i32
  }
  func.func @transform_2(%arg0: i32, %arg1: i32) -> (i32, i32, i32) {
    %c0_i32 = arith.constant 0 : i32
    %c0_i32_0 = arith.constant 0 : i32
    return %arg0, %arg1, %c0_i32 : i32, i32, i32
  }
}

</mosaic_0001>

<llo_original>
// kernel: tpu_custom_call.1
$region0: #{tpu_custom_call.1}
  #allocation0 [shape = 'u32[]', space=smem, size = 0x4, offset = 0x4, fixed_abs, tag = 'smem constant byte address 0x4 - core index']
  #allocation1 [shape = 'u32[144,128]{1,0:T(1,128)}', space=vmem, size = 0x12000, scoped, tag = 'internal scratch']
  %s0 = inlined_call_operand.vmem [shape: f32[2,1,1], index: 0, kind: input, shape index: {}]
  %s1 = inlined_call_operand.hbm [shape: f32[2,8,128], index: 1, kind: input, shape index: {}]
  %s2 = inlined_call_operand.hbm [shape: f32[2,8,128], index: 2, kind: output, shape index: {}]
  %s3 = sld [smem:[#allocation0]]
  $region45: #{tpu_custom_call.1} parent=0
    _
  %s5 = ssub.s32 1, %s3
  %s6 = scalar_select 0, %s5, %s3
  $region1: #{tpu_custom_call.1} parent=0
    #allocation2 [shape = 'u8[8192]{0}', space=vmem, size = 0x2000, scoped, tag = 'input window, operand 1']
    #allocation3 [shape = 's32[2]{0}', space=sflag, size = 0x8, scoped, tag = 'scoped memory for tpu_custom_call.1']
    #allocation4 [shape = 's32[2]{0}', space=sflag, size = 0x8, scoped, tag = 'scoped memory for tpu_custom_call.1']
    #allocation5 [shape = 'u8[8192]{0}', space=vmem, size = 0x2000, scoped, tag = 'output window, operand 0']
    %7 = vsyncpa [#allocation3], 0
    %s8 = scalar_lea.sflag [#allocation3], 1
    %9 = vsyncpa %s8, 0
    %10 = vsyncpa [#allocation4], 0
    %s11 = scalar_lea.sflag [#allocation4], 1
    %12 = vsyncpa %s11, 0
    loop: start=0, step=1, limit=4
    $region2: #{tpu_custom_call.1} parent=1 // loop_pre_header
      _
    $region3: #{tpu_custom_call.1} parent=1 // loop_header
      %s14 = sphi 0, %s18
      %p15 = scmp.ge.s32.totalorder %s14, 4
      %s21 = sphi 0, %s33
      %s22 = sphi 0, %s29
      %s23 = sphi 0, %s21
      %s24 = sphi 0, %s22
      %s25 = sphi 0, %s23
      %s26 = sphi 0, %s24
      %s36 = sphi 0, %s38
      %s39 = sphi 0, %s36
      %s40 = sphi 0, %s39
      %s56 = sphi 0, %s40
      %s64 = sphi 0, %s66
      %s67 = sphi 0, %s64
      %s68 = sphi 0, %s67
      %s84 = sphi 0, %s68
      %s92 = sphi 0, %s94
      %s95 = sphi 0, %s92
      %s96 = sphi 0, %s95
      %s112 = sphi 0, %s96
    $region4: #{tpu_custom_call.1} parent=1 // loop_header_branch
      %17 = sbr.rel (%p15) target = $region8
    $region5: #{tpu_custom_call.1} parent=1 // loop_body
      %s19 = ssub.s32 %s14, 1
      %s20 = ssub.s32 %s14, 2
      %s27 = sadd.s32 1, %s22
      %p28 = scmp.ge.s32.totalorder %s27, 1
      %s29 = scalar_select %p28, 0, %s27
      %s30 = sadd.s32 1, %s21
      %s31 = scalar_select %p28, %s30, %s21
      %p32 = scmp.ge.s32.totalorder %s31, 2
      %s33 = scalar_select %p32, 0, %s31
      %s34 = ssub.s32 %s21, %s33
      %p35 = scmp.eq.s32.totalorder %s34, 0
      %s37 = sadd.s32 %s36, 1
      %s38 = scalar_select %p35, %s36, %s37
      %p41 = pneg %p35
      %p42 = scmp.eq.s32.totalorder %s14, 1
      %p43 = por %p41, %p42
      %p44 = scmp.ne.s32.totalorder %s36, %s39
      %p45 = scmp.eq.s32.totalorder %s14, 0
      %p46 = por %p44, %p45
      %p47 = scmp.ne.s32.totalorder %s36, %s39
      %p48 = scmp.eq.s32.totalorder %s19, 1
      %p49 = por %p47, %p48
      %p50 = scmp.ne.s32.totalorder %s39, %s40
      %p51 = scmp.eq.s32.totalorder %s19, 0
      %p52 = por %p50, %p51
      %p53 = scmp.ne.s32.totalorder %s39, %s40
      %p54 = scmp.eq.s32.totalorder %s20, 1
      %p55 = por %p53, %p54
      %p57 = scmp.ne.s32.totalorder %s40, %s56
      %p58 = scmp.eq.s32.totalorder %s20, 0
      %p59 = por %p57, %p58
      %s60 = ssub.s32 %s21, %s33
      %s61 = ssub.s32 %s22, %s29
      %s62 = sor.u32 %s60, %s61
      %p63 = scmp.eq.s32.totalorder %s62, 0
      %s65 = sadd.s32 %s64, 1
      %s66 = scalar_select %p63, %s64, %s65
      %p69 = pneg %p63
      %p70 = scmp.eq.s32.totalorder %s14, 1
      %p71 = por %p69, %p70
      %p72 = scmp.ne.s32.totalorder %s64, %s67
      %p73 = scmp.eq.s32.totalorder %s14, 0
      %p74 = por %p72, %p73
      %p75 = scmp.ne.s32.totalorder %s64, %s67
      %p76 = scmp.eq.s32.totalorder %s19, 1
      %p77 = por %p75, %p76
      %p78 = scmp.ne.s32.totalorder %s67, %s68
      %p79 = scmp.eq.s32.totalorder %s19, 0
      %p80 = por %p78, %p79
      %p81 = scmp.ne.s32.totalorder %s67, %s68
      %p82 = scmp.eq.s32.totalorder %s20, 1
      %p83 = por %p81, %p82
      %p85 = scmp.ne.s32.totalorder %s68, %s84
      %p86 = scmp.eq.s32.totalorder %s20, 0
      %p87 = por %p85, %p86
      %s88 = ssub.s32 %s21, %s33
      %s89 = ssub.s32 %s22, %s29
      %s90 = sor.u32 %s88, %s89
      %p91 = scmp.eq.s32.totalorder %s90, 0
      %s93 = sadd.s32 %s92, 1
      %s94 = scalar_select %p91, %s92, %s93
      %p97 = pneg %p91
      %p98 = scmp.eq.s32.totalorder %s14, 1
      %p99 = por %p97, %p98
      %p100 = scmp.ne.s32.totalorder %s92, %s95
      %p101 = scmp.eq.s32.totalorder %s14, 0
      %p102 = por %p100, %p101
      %p103 = scmp.ne.s32.totalorder %s92, %s95
      %p104 = scmp.eq.s32.totalorder %s19, 1
      %p105 = por %p103, %p104
      %p106 = scmp.ne.s32.totalorder %s95, %s96
      %p107 = scmp.eq.s32.totalorder %s19, 0
      %p108 = por %p106, %p107
      %p109 = scmp.ne.s32.totalorder %s95, %s96
      %p110 = scmp.eq.s32.totalorder %s20, 1
      %p111 = por %p109, %p110
      %p113 = scmp.ne.s32.totalorder %s96, %s112
      %p114 = scmp.eq.s32.totalorder %s20, 0
      %p115 = por %p113, %p114
      %p116 = scmp.le.s32.totalorder 1, %s14
      %p117 = scmp.lt.s32.totalorder %s14, 3
      %p118 = pnand %p116, %p117
      %p119 = pneg %p118
      // Predicated region
      $region9: #{tpu_custom_call.1} parent=5 // pred_check
        _
      $region10: #{tpu_custom_call.1} parent=5 // pred_check_branch
        %121 = sbr.rel (%p118) target = $region12
      $region11: #{tpu_custom_call.1} parent=5 // pred_region
        %s122 = ssub.s32 %s14, 1
      $region12: #{tpu_custom_call.1} parent=5 // pred_fallthru
        _
      %p123 = scmp.lt.s32.totalorder %s14, 2
      // Predicated region
      $region13: #{tpu_custom_call.1} parent=5 // pred_check
        %p124 = pneg %p123
      $region14: #{tpu_custom_call.1} parent=5 // pred_check_branch
        %126 = sbr.rel (%p124) target = $region16
      $region15: #{tpu_custom_call.1} parent=5 // pred_region
        // Predicated region
        $region17: #{tpu_custom_call.1} parent=15 // pred_check
          %p127 = pneg %p46
        $region18: #{tpu_custom_call.1} parent=15 // pred_check_branch
          %129 = sbr.rel (%p127) target = $region20
        $region19: #{tpu_custom_call.1} parent=15 // pred_region
          %p130 = scmp.lt.s32.totalorder %s21, 1
          %s131 = scalar_select %p130, %s21, 1
          %s132 = scalar_lea.vmem %s0, %s131
        $region20: #{tpu_custom_call.1} parent=15 // pred_fallthru
          _
        // Predicated region
        $region21: #{tpu_custom_call.1} parent=15 // pred_check
          %p133 = pneg %p74
        $region22: #{tpu_custom_call.1} parent=15 // pred_check_branch
          %135 = sbr.rel (%p133) target = $region24
        $region23: #{tpu_custom_call.1} parent=15 // pred_region
          %s136 = sand.u32 %s64, 1
          %s137 = scalar_lea.sflag [#allocation3], %s136
          %s138 = sand.u32 %s64, 1
          %s139 = smul.addr %s138, 8
          %s140 = scalar_lea.vmem [#allocation2], %s139
          %s142 = ssub.s32 128, 128
          %143 = vsyncadd %s137, %s142
          %s144 = sadd.s32 %s22, %s21
          %s145 = smul.addr %s144, 128
          %s146 = scalar_lea.hbm %s1, %s145
          %s148 = sshll.u32 %s140, 4
          %s149 = int_to_ptr.vmem [resolvable:$true] %s148
          %151 = dma.hbm_to_vmem [thread:$0]  %s146, 128, %s149, %s137
        $region24: #{tpu_custom_call.1} parent=15 // pred_fallthru
          _
      $region16: #{tpu_custom_call.1} parent=5 // pred_fallthru
        _
      %p152 = scmp.le.s32.totalorder 1, %s14
      %p153 = scmp.lt.s32.totalorder %s14, 3
      %p154 = pnand %p152, %p153
      %p155 = pneg %p154
      // Predicated region
      $region25: #{tpu_custom_call.1} parent=5 // pred_check
        _
      $region26: #{tpu_custom_call.1} parent=5 // pred_check_branch
        %157 = sbr.rel (%p154) target = $region28
      $region27: #{tpu_custom_call.1} parent=5 // pred_region
        %s158 = ssub.s32 %s14, 1
        %s159 = sand.u32 %s67, 1
        %s160 = scalar_lea.sflag [#allocation3], %s159
        %s161 = sand.u32 %s67, 1
        %s162 = smul.addr %s161, 8
        %s163 = scalar_lea.vmem [#allocation2], %s162
        // Predicated region
        $region29: #{tpu_custom_call.1} parent=27 // pred_check
          %p164 = pneg %p80
        $region30: #{tpu_custom_call.1} parent=27 // pred_check_branch
          %166 = sbr.rel (%p164) target = $region32
        $region31: #{tpu_custom_call.1} parent=27 // pred_region
          %167 = dma.done %s160, 128
        $region32: #{tpu_custom_call.1} parent=27 // pred_fallthru
          _
        %p168 = scmp.lt.s32.totalorder %s23, 1
        %s169 = scalar_select %p168, %s23, 1
        %s170 = scalar_lea.vmem %s0, %s169
        %p171 = pneg %p52
        %p172 = pneg %p49
        %s173 = sand.u32 %s67, 1
        %s174 = scalar_lea.sflag [#allocation3], %s173
        %s175 = sand.u32 %s67, 1
        %s176 = smul.addr %s175, 8
        %s177 = scalar_lea.vmem [#allocation2], %s176
        %p178 = pneg %p80
        %p179 = pneg %p77
        %p180 = pneg %p108
        %p181 = pneg %p105
        %s182 = sand.u32 %s95, 1
        %s183 = scalar_lea.sflag [#allocation4], %s182
        %s184 = sand.u32 %s95, 1
        %s185 = smul.addr %s184, 8
        %s186 = scalar_lea.vmem [#allocation5], %s185
        %p187 = scmp.lt.s32.totalorder %s23, 1
        %s188 = scalar_select %p187, %s23, 1
        %s189 = scalar_lea.vmem %s0, %s188
        %v190 = vld [vmem:[%s163] sm:$0xff]
        %v191 = vld [vmem:[%s189] sm:$0x1]
        %v193 = vlaneseq
        %v194 = vshrl.u32 %v193, 7
        %v195 = vsub.s32 0, %v194
        %v196 = vrot.slane %v191, %v195
        %197 = vset.pattern.permute.xlu0 0
        %198 = vperm.xlu0 %197, %v196
        %v199 = vpop.permute.xlu0 %198
        %v201 = vmul.f32 %v190, %v199
        %202 = vst [vmem:[%s186] sm:$0xff] %v201
        %s203 = sand.u32 %s95, 1
        %s204 = scalar_lea.sflag [#allocation4], %s203
        %s205 = sand.u32 %s95, 1
        %s206 = smul.addr %s205, 8
        %s207 = scalar_lea.vmem [#allocation5], %s206
        // Predicated region
        $region33: #{tpu_custom_call.1} parent=27 // pred_check
          %p208 = pneg %p105
        $region34: #{tpu_custom_call.1} parent=27 // pred_check_branch
          %210 = sbr.rel (%p208) target = $region36
        $region35: #{tpu_custom_call.1} parent=27 // pred_region
          %s212 = ssub.s32 128, 128
          %213 = vsyncadd %s204, %s212
          %s214 = sadd.s32 %s24, %s23
          %s215 = smul.addr %s214, 128
          %s216 = scalar_lea.hbm %s2, %s215
          %s218 = sshll.u32 %s207, 4
          %s219 = int_to_ptr.vmem [resolvable:$true] %s218
          %221 = dma.vmem_to_hbm [thread:$0]  %s219, 128, %s216, %s204
        $region36: #{tpu_custom_call.1} parent=27 // pred_fallthru
          _
      $region28: #{tpu_custom_call.1} parent=5 // pred_fallthru
        _
      %p222 = scmp.le.s32.totalorder 2, %s14
      // Predicated region
      $region37: #{tpu_custom_call.1} parent=5 // pred_check
        %p223 = pneg %p222
      $region38: #{tpu_custom_call.1} parent=5 // pred_check_branch
        %225 = sbr.rel (%p223) target = $region40
      $region39: #{tpu_custom_call.1} parent=5 // pred_region
        %s226 = ssub.s32 %s14, 2
        // Predicated region
        $region41: #{tpu_custom_call.1} parent=39 // pred_check
          %p227 = pneg %p111
        $region42: #{tpu_custom_call.1} parent=39 // pred_check_branch
          %229 = sbr.rel (%p227) target = $region44
        $region43: #{tpu_custom_call.1} parent=39 // pred_region
          %s230 = sand.u32 %s96, 1
          %s231 = scalar_lea.sflag [#allocation4], %s230
          %s232 = sand.u32 %s96, 1
          %s233 = smul.addr %s232, 8
          %s234 = scalar_lea.vmem [#allocation5], %s233
          %235 = dma.done %s231, 128
        $region44: #{tpu_custom_call.1} parent=39 // pred_fallthru
          _
      $region40: #{tpu_custom_call.1} parent=5 // pred_fallthru
        _
    $region6: #{tpu_custom_call.1} parent=1 // loop_footer
      %s18 = sadd.s32 1, %s14
    $region7: #{tpu_custom_call.1} parent=1 // loop_footer_branch
      %13 = sbr.rel target = $region3
    $region8: #{tpu_custom_call.1} parent=1 // loop_exit
      _
    %236 = vsyncpa [#allocation3], 1
    %s237 = scalar_lea.sflag [#allocation3], 1
    %238 = vsyncpa %s237, 1
    %239 = vsyncpa [#allocation4], 1
    %s240 = scalar_lea.sflag [#allocation4], 1
    %241 = vsyncpa %s240, 1

</llo_original>
